<compile_context>
chip_gen: v7x
topology: tpu7x:2x2x1
jax: 0.10.0
libtpu: 0.0.40
codegen_flags: <defaults>
</compile_context>

<pallas_src>
import jax
import jax.numpy as jnp
from jax import lax
from jax.experimental import pallas as pl
from jax.experimental.pallas import tpu as pltpu


def _toy_model_kernel(x_ref, wf_ref, mask_ref, b_ref, o_ref):
    # x_ref:    (Bt, I*F)    batch tile of flattened features (lane-dense slab)
    # wf_ref:   (I*F, H)     wf[i*F + f, h] = W[i, h, f]
    # mask_ref: (I*F, I*F)   1.0 where row/col belong to the same instance
    # b_ref:    (1, I*F)     flattened b_final
    # o_ref:    (Bt, I*F)
    wf = wf_ref[...]

    # Gram over the hidden dim for every (instance, feature) pair:
    #   gram[p, q] = sum_h wf[p, h] * wf[q, h]
    gram = lax.dot_general(
        wf, wf,
        dimension_numbers=(((1,), (1,)), ((), ())),
        preferred_element_type=jnp.float32,
    )
    # Zero the cross-instance blocks -> blockdiag_i(W_i^T W_i).  The "wasted"
    # zero flops are free: the MXU is otherwise idle at this contraction depth.
    gram = gram * mask_ref[...]

    # Single MXU contraction of depth I*F:
    #   out[b, i*F + g] = sum_f x[b, i*F + f] * gram[i*F + f, i*F + g]
    out = jnp.dot(x_ref[...], gram, preferred_element_type=jnp.float32)

    # f32 epilogue (bias + ReLU); cast only at the final store.
    o_ref[...] = jnp.maximum(out + b_ref[...], 0.0).astype(o_ref.dtype)


def toy_model_forward(features, W, b_final, *, batch_tile=None):
    """features: (batch, inst, feats); W: (inst, hidden, feats); b_final: (inst, feats).

    Returns (batch, inst, feats) = ReLU(W^T W x + b_final), per instance.
    """
    B, I, F = features.shape
    Iw, H, Fw = W.shape
    assert (Iw, Fw) == (I, F), "W shape must be (inst, hidden, feats)"
    assert b_final.shape == (I, F)
    IF = I * F

    # Free contiguous views of activations / bias (no HBM transpose traffic),
    # plus a tiny one-off weight re-layout (I*H*F floats).
    x_flat = features.reshape(B, IF)                       # (B, I*F)
    wf = jnp.transpose(W, (0, 2, 1)).reshape(IF, H)        # (I*F, H)
    b_flat = b_final.reshape(1, IF)                        # (1, I*F)

    # Shape-derived constant: block-diagonal (same-instance) mask.
    inst_id = jnp.arange(IF, dtype=jnp.int32) // F
    mask = (inst_id[:, None] == inst_id[None, :]).astype(jnp.float32)  # (I*F, I*F)

    # Batch tiling: a single invocation at small scale; a "parallel" batch
    # grid axis (multiple-of-8 rows per tile) when batch grows, so v7x's
    # second TensorCore gets work.
    if batch_tile is None:
        batch_tile = B if B <= 1024 else 512
    if (B % batch_tile != 0) or (batch_tile != B and batch_tile % 8 != 0):
        batch_tile = B
    n_tiles = B // batch_tile

    out_flat = pl.pallas_call(
        _toy_model_kernel,
        out_shape=jax.ShapeDtypeStruct((B, IF), features.dtype),
        grid_spec=pltpu.PrefetchScalarGridSpec(
            num_scalar_prefetch=0,
            grid=(n_tiles,),
            in_specs=[
                pl.BlockSpec((batch_tile, IF), lambda i: (i, 0)),
                # Constant block index: weights/mask/bias DMA'd once, VMEM-resident.
                pl.BlockSpec((IF, H), lambda i: (0, 0)),
                pl.BlockSpec((IF, IF), lambda i: (0, 0)),
                pl.BlockSpec((1, IF), lambda i: (0, 0)),
            ],
            out_specs=pl.BlockSpec((batch_tile, IF), lambda i: (i, 0)),
        ),
        compiler_params=pltpu.CompilerParams(
            dimension_semantics=("parallel",),
            vmem_limit_bytes=32 * 1024 * 1024,  # safe on v5e/v6e/v7x
        ),
    )(x_flat, wf, mask.astype(features.dtype), b_flat)

    return out_flat.reshape(B, I, F)


def init_params(key, n_inst, d_hidden, n_features):
    """Xavier-normal-style init for W (matching torch fan rules for 3-D tensors),
    zeros for b_final (matching the PyTorch module)."""
    fan_in = d_hidden * n_features
    fan_out = n_inst * n_features
    std = (2.0 / (fan_in + fan_out)) ** 0.5
    W = std * jax.random.normal(key, (n_inst, d_hidden, n_features), dtype=jnp.float32)
    b_final = jnp.zeros((n_inst, n_features), dtype=jnp.float32)
    return W, b_final


def _reference_forward(features, W, b_final):
    h = jnp.einsum("bif,ihf->bih", features, W)
    out = jnp.einsum("bih,ihf->bif", h, W)
    return jax.nn.relu(out + b_final[None, :, :])


if __name__ == "__main__":
    n_inst, n_features, d_hidden = 8, 5, 2
    batch = 8

    key = jax.random.PRNGKey(0)
    k_w, k_x, k_b = jax.random.split(key, 3)

    W, b_final = init_params(k_w, n_inst, d_hidden, n_features)
    # Small non-zero bias so the bias-add + ReLU path is actually exercised.
    b_final = 0.1 * jax.random.normal(k_b, (n_inst, n_features), dtype=jnp.float32)
    features = jax.random.uniform(k_x, (batch, n_inst, n_features), dtype=jnp.float32)

    out = toy_model_forward(features, W, b_final)
    out = jax.block_until_ready(out)

    ref = _reference_forward(features, W, b_final)
    assert out.shape == (batch, n_inst, n_features)
    assert jnp.allclose(out, ref, atol=1e-5, rtol=1e-5), "mismatch vs reference"

    print("KERNEL_OK")
</pallas_src>

<mosaic_0001>
module attributes {stable_mosaic.version = 11 : i64} {
  func.func @_toy_model_kernel(%arg0: i32, %arg1: memref<8x40xf32, #tpu.memory_space<vmem>>, %arg2: memref<40x2xf32, #tpu.memory_space<vmem>>, %arg3: memref<40x40xf32, #tpu.memory_space<vmem>>, %arg4: memref<1x40xf32, #tpu.memory_space<vmem>>, %arg5: memref<8x40xf32, #tpu.memory_space<vmem>>) attributes {dimension_semantics = [#tpu.dimension_semantics<parallel>], iteration_bounds = array<i64: 1>, scalar_prefetch = 0 : i64, scratch_operands = 0 : i64, tpu.core_type = #tpu.core_type<tc>, window_params = [{transform_indices = @transform_0, window_bounds = array<i64: 8, 40>}, {pipeline_mode = #tpu.pipeline_mode<synchronous>, transform_indices = @transform_1, window_bounds = array<i64: 40, 2>}, {pipeline_mode = #tpu.pipeline_mode<synchronous>, transform_indices = @transform_2, window_bounds = array<i64: 40, 40>}, {pipeline_mode = #tpu.pipeline_mode<synchronous>, transform_indices = @transform_3, window_bounds = array<i64: 1, 40>}, {transform_indices = @transform_4, window_bounds = array<i64: 8, 40>}]} {
    %c0 = arith.constant 0 : index
    %c0_0 = arith.constant 0 : index
    %0 = vector.load %arg2[%c0, %c0_0] : memref<40x2xf32, #tpu.memory_space<vmem>>, vector<40x2xf32>
    %cst = arith.constant dense<0.000000e+00> : vector<40x40xf32>
    %1 = tpu.matmul %0, %0, %cst {dimension_numbers = #tpu.dot_dimension_numbers<[1], [1], [0], [0], [0, 0, 1, 0], [], []>} : vector<40x2xf32>, vector<40x2xf32>, vector<40x40xf32> -> vector<40x40xf32>
    %c0_1 = arith.constant 0 : index
    %c0_2 = arith.constant 0 : index
    %2 = vector.load %arg3[%c0_1, %c0_2] : memref<40x40xf32, #tpu.memory_space<vmem>>, vector<40x40xf32>
    %3 = arith.mulf %1, %2 : vector<40x40xf32>
    %c0_3 = arith.constant 0 : index
    %c0_4 = arith.constant 0 : index
    %4 = vector.load %arg1[%c0_3, %c0_4] : memref<8x40xf32, #tpu.memory_space<vmem>>, vector<8x40xf32>
    %cst_5 = arith.constant dense<0.000000e+00> : vector<8x40xf32>
    %5 = tpu.matmul %4, %3, %cst_5 {dimension_numbers = #tpu.dot_dimension_numbers<[1], [0], [0], [1], [0, 0, 1, 1], [], []>} : vector<8x40xf32>, vector<40x40xf32>, vector<8x40xf32> -> vector<8x40xf32>
    %c0_6 = arith.constant 0 : index
    %c0_7 = arith.constant 0 : index
    %6 = vector.load %arg4[%c0_6, %c0_7] : memref<1x40xf32, #tpu.memory_space<vmem>>, vector<1x40xf32>
    %7 = vector.broadcast %6 : vector<1x40xf32> to vector<8x40xf32>
    %8 = arith.addf %5, %7 : vector<8x40xf32>
    %cst_8 = arith.constant 0.000000e+00 : f32
    %9 = vector.broadcast %cst_8 : f32 to vector<8x40xf32>
    %10 = arith.maximumf %8, %9 : vector<8x40xf32>
    %c0_9 = arith.constant 0 : index
    %c0_10 = arith.constant 0 : index
    %11 = vector.load %arg5[%c0_9, %c0_10] : memref<8x40xf32, #tpu.memory_space<vmem>>, vector<8x40xf32>
    tpu.vector_store %arg5[%c0_9, %c0_10], %10 {strides = array<i32>} : memref<8x40xf32, #tpu.memory_space<vmem>>, vector<8x40xf32>,
    return
  }
  func.func @transform_0(%arg0: i32) -> (i32, i32) {
    %c0_i32 = arith.constant 0 : i32
    %c0_i32_0 = arith.constant 0 : i32
    return %arg0, %c0_i32 : i32, i32
  }
  func.func @transform_1(%arg0: i32) -> (i32, i32) {
    %c0_i32 = arith.constant 0 : i32
    %c0_i32_0 = arith.constant 0 : i32
    %c0_i32_1 = arith.constant 0 : i32
    return %c0_i32, %c0_i32_0 : i32, i32
  }
  func.func @transform_2(%arg0: i32) -> (i32, i32) {
    %c0_i32 = arith.constant 0 : i32
    %c0_i32_0 = arith.constant 0 : i32
    %c0_i32_1 = arith.constant 0 : i32
    return %c0_i32, %c0_i32_0 : i32, i32
  }
  func.func @transform_3(%arg0: i32) -> (i32, i32) {
    %c0_i32 = arith.constant 0 : i32
    %c0_i32_0 = arith.constant 0 : i32
    %c0_i32_1 = arith.constant 0 : i32
    return %c0_i32, %c0_i32_0 : i32, i32
  }
  func.func @transform_4(%arg0: i32) -> (i32, i32) {
    %c0_i32 = arith.constant 0 : i32
    %c0_i32_0 = arith.constant 0 : i32
    return %arg0, %c0_i32 : i32, i32
  }
}

</mosaic_0001>

<llo_original>
// kernel: tpu_custom_call.1
$region0: #{tpu_custom_call.1}
  #allocation0 [shape = 'u32[]', space=smem, size = 0x4, offset = 0x4, fixed_abs, tag = 'smem constant byte address 0x4 - core index']
  #allocation1 [shape = 'u32[144,128]{1,0:T(1,128)}', space=vmem, size = 0x12000, scoped, tag = 'internal scratch']
  %s0 = inlined_call_operand.vmem [shape: f32[8,40], index: 0, kind: input, shape index: {}]
  %s1 = inlined_call_operand.vmem [shape: f32[40,2], index: 1, kind: input, shape index: {}]
  %s2 = inlined_call_operand.vmem [shape: f32[40,40], index: 2, kind: input, shape index: {}]
  %s3 = inlined_call_operand.vmem [shape: f32[1,40], index: 3, kind: input, shape index: {}]
  %s4 = inlined_call_operand.hbm [shape: f32[8,40], index: 4, kind: output, shape index: {}]
  %s5 = sld [smem:[#allocation0]]
  $region26: #{tpu_custom_call.1} parent=0
    _
  %s7 = ssub.s32 1, %s5
  %s8 = scalar_select 0, %s7, %s5
  $region1: #{tpu_custom_call.1} parent=0
    #allocation2 [shape = 'u8[4096]{0}', space=vmem, size = 0x1000, scoped, tag = 'output window, operand 0, single buffered']
    #allocation3 [shape = 's32[1]{0}', space=sflag, size = 0x4, scoped, tag = 'scoped memory for tpu_custom_call.1']
    %9 = vsyncpa [#allocation3], 0
    // Predicated region
    $region2: #{tpu_custom_call.1} parent=1 // pred_check
      _
    $region3: #{tpu_custom_call.1} parent=1 // pred_check_branch
      %11 = sbr.rel (0) target = $region5
    $region4: #{tpu_custom_call.1} parent=1 // pred_region
      _
    $region5: #{tpu_custom_call.1} parent=1 // pred_fallthru
      _
    // Predicated region
    $region6: #{tpu_custom_call.1} parent=1 // pred_check
      _
    $region7: #{tpu_custom_call.1} parent=1 // pred_check_branch
      %13 = sbr.rel (0) target = $region9
    $region8: #{tpu_custom_call.1} parent=1 // pred_region
      _
    $region9: #{tpu_custom_call.1} parent=1 // pred_fallthru
      _
    // Predicated region
    $region10: #{tpu_custom_call.1} parent=1 // pred_check
      _
    $region11: #{tpu_custom_call.1} parent=1 // pred_check_branch
      %15 = sbr.rel (0) target = $region13
    $region12: #{tpu_custom_call.1} parent=1 // pred_region
      _
    $region13: #{tpu_custom_call.1} parent=1 // pred_fallthru
      _
    // Predicated region
    $region14: #{tpu_custom_call.1} parent=1 // pred_check
      _
    $region15: #{tpu_custom_call.1} parent=1 // pred_check_branch
      %17 = sbr.rel (0) target = $region17
    $region16: #{tpu_custom_call.1} parent=1 // pred_region
      _
    $region17: #{tpu_custom_call.1} parent=1 // pred_fallthru
      _
    %v18 = vld [vmem:[%s1] sm:$0xff]
    %v19 = vld [vmem:[%s1 + $0x8] sm:$0xff]
    %v20 = vld [vmem:[%s1 + $0x10] sm:$0xff]
    %v21 = vld [vmem:[%s1 + $0x18] sm:$0xff]
    %v22 = vld [vmem:[%s1 + $0x20] sm:$0xff]
    %vm23 = vcmask 15360
    %v25 = vsel %vm23, %v18, 0
    %v28 = vsel %vm23, %v19, 0
    %v31 = vsel %vm23, %v20, 0
    %v34 = vsel %vm23, %v21, 0
    %v37 = vsel %vm23, %v22, 0
    %39 = vmatprep.subr.mxu0 0.0
    %40 = vmatpush1.xpose.msra.mxu0 %v25
    %41 = vmatprep.subr.mxu0 0.0
    %42 = vmatpush1.xpose.msra.mxu0 %v28
    %43 = vmatprep.subr.mxu0 0.0
    %44 = vmatpush1.xpose.msra.mxu0 %v31
    %45 = vmatprep.subr.mxu0 0.0
    %46 = vmatpush1.xpose.msra.mxu0 %v34
    %47 = vmatprep.subr.mxu0 0.0
    %48 = vmatpush1.xpose.msra.mxu0 %v37
    %49 = vmatprep.subr.mxu0 0.0
    %50 = vmatpush1.xpose.msra.mxu0 0.0
    %51 = vmatprep.subr.mxu0 0.0
    %52 = vmatpush1.xpose.msra.mxu0 0.0
    %53 = vmatprep.subr.mxu0 0.0
    %54 = vmatpush1.xpose.msra.mxu0 0.0
    %55 = vmatprep.subr.mxu0 0.0
    %56 = vmatpush1.xpose.msra.mxu0 0.0
    %57 = vmatprep.subr.mxu0 0.0
    %58 = vmatpush1.xpose.msra.mxu0 0.0
    %59 = vmatprep.subr.mxu0 0.0
    %60 = vmatpush1.xpose.msra.mxu0 0.0
    %61 = vmatprep.subr.mxu0 0.0
    %62 = vmatpush1.xpose.msra.mxu0 0.0
    %63 = vmatprep.subr.mxu0 0.0
    %64 = vmatpush1.xpose.msra.mxu0 0.0
    %65 = vmatprep.subr.mxu0 0.0
    %66 = vmatpush1.xpose.msra.mxu0 0.0
    %67 = vmatprep.subr.mxu0 0.0
    %68 = vmatpush1.xpose.msra.mxu0 0.0
    %69 = vmatprep.subr.mxu0 0.0
    %70 = vmatpush1.xpose.msra.mxu0 0.0
    %71 = vmatprep.subr.mxu0 0.0
    %72 = vmatpush1.xpose.msra.mxu0 0.0
    %73 = vmatprep.subr.mxu0 0.0
    %74 = vmatpush1.xpose.msra.mxu0 0.0
    %75 = vmatprep.subr.mxu0 0.0
    %76 = vmatpush1.xpose.msra.mxu0 0.0
    %77 = vmatprep.subr.mxu0 0.0
    %78 = vmatpush1.xpose.msra.mxu0 0.0
    %79 = vmatprep.subr.mxu0 0.0
    %80 = vmatpush1.xpose.msra.mxu0 0.0
    %81 = vmatprep.subr.mxu0 0.0
    %82 = vmatpush1.xpose.msra.mxu0 0.0
    %83 = vmatprep.subr.mxu0 0.0
    %84 = vmatpush1.xpose.msra.mxu0 0.0
    %85 = vmatprep.subr.mxu0 0.0
    %86 = vmatpush1.xpose.msra.mxu0 0.0
    %87 = vmatprep.subr.mxu0 0.0
    %88 = vmatpush1.xpose.msra.mxu0 0.0
    %89 = vmatprep.subr.mxu0 0.0
    %90 = vmatpush1.xpose.msra.mxu0 0.0
    %91 = vmatprep.subr.mxu0 0.0
    %92 = vmatpush1.xpose.msra.mxu0 0.0
    %93 = vmatprep.subr.mxu0 0.0
    %94 = vmatpush1.xpose.msra.mxu0 0.0
    %95 = vmatprep.subr.mxu0 0.0
    %96 = vmatpush1.xpose.msra.mxu0 0.0
    %97 = vmatprep.subr.mxu0 0.0
    %98 = vmatpush1.xpose.msra.mxu0 0.0
    %99 = vmatprep.subr.mxu0 0.0
    %100 = vmatpush1.xpose.msra.mxu0 0.0
    %101 = vmatprep.subr.mxu0 0.0
    %102 = vmatpush1.xpose.msra.mxu0 0.0
    %103 = vmatprep.mubr.f32.mxu0 0.0
    %104 = vmatmul.mubr.f32.gmra.mrb[0].mxu0 %v25
    %v105 = vpop.f32.mrb[0].mxu0
    %v106 = vadd.f32 0.0, %v105
    %v107 = vpop.f32.mrb[0].mxu0
    %108 = vmatprep.mubr.f32.mxu0 0.0
    %109 = vmatmul.mubr.f32.gmra.mrb[0].mxu0 %v28
    %v110 = vpop.f32.mrb[0].mxu0
    %v111 = vadd.f32 0.0, %v110
    %v112 = vpop.f32.mrb[0].mxu0
    %113 = vmatprep.mubr.f32.mxu0 0.0
    %114 = vmatmul.mubr.f32.gmra.mrb[0].mxu0 %v31
    %v115 = vpop.f32.mrb[0].mxu0
    %v116 = vadd.f32 0.0, %v115
    %v117 = vpop.f32.mrb[0].mxu0
    %118 = vmatprep.mubr.f32.mxu0 0.0
    %119 = vmatmul.mubr.f32.gmra.mrb[0].mxu0 %v34
    %v120 = vpop.f32.mrb[0].mxu0
    %v121 = vadd.f32 0.0, %v120
    %v122 = vpop.f32.mrb[0].mxu0
    %123 = vmatprep.mubr.f32.mxu0 0.0
    %124 = vmatmul.mubr.f32.gmra.mrb[0].mxu0 %v37
    %v125 = vpop.f32.mrb[0].mxu0
    %v126 = vadd.f32 0.0, %v125
    %v127 = vpop.f32.mrb[0].mxu0
    %128 = vdwg.mxu0
    %v129 = vld [vmem:[%s2] sm:$0xff]
    %v130 = vld [vmem:[%s2 + $0x8] sm:$0xff]
    %v131 = vld [vmem:[%s2 + $0x10] sm:$0xff]
    %v132 = vld [vmem:[%s2 + $0x18] sm:$0xff]
    %v133 = vld [vmem:[%s2 + $0x20] sm:$0xff]
    %v134 = vmul.f32 %v106, %v129
    %v135 = vmul.f32 %v111, %v130
    %v136 = vmul.f32 %v116, %v131
    %v137 = vmul.f32 %v121, %v132
    %v138 = vmul.f32 %v126, %v133
    %v139 = vld [vmem:[%s0] sm:$0xff]
    %v140 = vld [vmem:[%s3] sm:$0x1]
    %v142 = vlaneseq
    %v143 = vshrl.u32 %v142, 7
    %v144 = vsub.s32 0, %v143
    %v145 = vrot.slane %v140, %v144
    %vm147 = vcmask 326656
    %v149 = vsel %vm147, %v139, 0
    %151 = vmatprep.subr.mxu0 0.0
    %152 = vmatpush1.msra.mxu0 %v134
    %153 = vmatprep.subr.mxu0 0.0
    %154 = vmatpush1.msra.mxu0 %v135
    %155 = vmatprep.subr.mxu0 0.0
    %156 = vmatpush1.msra.mxu0 %v136
    %157 = vmatprep.subr.mxu0 0.0
    %158 = vmatpush1.msra.mxu0 %v137
    %159 = vmatprep.subr.mxu0 0.0
    %160 = vmatpush1.msra.mxu0 %v138
    %161 = vmatprep.subr.mxu0 0.0
    %162 = vmatpush1.msra.mxu0 0.0
    %163 = vmatprep.subr.mxu0 0.0
    %164 = vmatpush1.msra.mxu0 0.0
    %165 = vmatprep.subr.mxu0 0.0
    %166 = vmatpush1.msra.mxu0 0.0
    %167 = vmatprep.subr.mxu0 0.0
    %168 = vmatpush1.msra.mxu0 0.0
    %169 = vmatprep.subr.mxu0 0.0
    %170 = vmatpush1.msra.mxu0 0.0
    %171 = vmatprep.subr.mxu0 0.0
    %172 = vmatpush1.msra.mxu0 0.0
    %173 = vmatprep.subr.mxu0 0.0
    %174 = vmatpush1.msra.mxu0 0.0
    %175 = vmatprep.subr.mxu0 0.0
    %176 = vmatpush1.msra.mxu0 0.0
    %177 = vmatprep.subr.mxu0 0.0
    %178 = vmatpush1.msra.mxu0 0.0
    %179 = vmatprep.subr.mxu0 0.0
    %180 = vmatpush1.msra.mxu0 0.0
    %181 = vmatprep.subr.mxu0 0.0
    %182 = vmatpush1.msra.mxu0 0.0
    %183 = vmatprep.subr.mxu0 0.0
    %184 = vmatpush1.msra.mxu0 0.0
    %185 = vmatprep.subr.mxu0 0.0
    %186 = vmatpush1.msra.mxu0 0.0
    %187 = vmatprep.subr.mxu0 0.0
    %188 = vmatpush1.msra.mxu0 0.0
    %189 = vmatprep.subr.mxu0 0.0
    %190 = vmatpush1.msra.mxu0 0.0
    %191 = vmatprep.subr.mxu0 0.0
    %192 = vmatpush1.msra.mxu0 0.0
    %193 = vmatprep.subr.mxu0 0.0
    %194 = vmatpush1.msra.mxu0 0.0
    %195 = vmatprep.subr.mxu0 0.0
    %196 = vmatpush1.msra.mxu0 0.0
    %197 = vmatprep.subr.mxu0 0.0
    %198 = vmatpush1.msra.mxu0 0.0
    %199 = vmatprep.subr.mxu0 0.0
    %200 = vmatpush1.msra.mxu0 0.0
    %201 = vmatprep.subr.mxu0 0.0
    %202 = vmatpush1.msra.mxu0 0.0
    %203 = vmatprep.subr.mxu0 0.0
    %204 = vmatpush1.msra.mxu0 0.0
    %205 = vmatprep.subr.mxu0 0.0
    %206 = vmatpush1.msra.mxu0 0.0
    %207 = vmatprep.subr.mxu0 0.0
    %208 = vmatpush1.msra.mxu0 0.0
    %209 = vmatprep.subr.mxu0 0.0
    %210 = vmatpush1.msra.mxu0 0.0
    %211 = vmatprep.subr.mxu0 0.0
    %212 = vmatpush1.msra.mxu0 0.0
    %213 = vmatprep.subr.mxu0 0.0
    %214 = vmatpush1.msra.mxu0 0.0
    %215 = vmatprep.mubr.f32.mxu0 0.0
    %216 = vmatmul.mubr.f32.gmra.mrb[0].mxu0 %v149
    %v217 = vpop.f32.mrb[0].mxu0
    %v218 = vadd.f32 %v145, %v217
    %v219 = vpop.f32.mrb[0].mxu0
    %220 = vdwg.mxu0
    %v221 = vmax.f32 %v218, 0.0
    %222 = vst.msk [vmem:[#allocation2] sm:$0xff] %vm147, %v221
    // Predicated region
    $region18: #{tpu_custom_call.1} parent=1 // pred_check
      _
    $region19: #{tpu_custom_call.1} parent=1 // pred_check_branch
      %224 = sbr.rel (0) target = $region21
    $region20: #{tpu_custom_call.1} parent=1 // pred_region
      %s226 = ssub.s32 128, 128
      %227 = vsyncadd [#allocation3], %s226
      %s229 = sshll.u32 [#allocation2], 4
      %s230 = int_to_ptr.vmem [resolvable:$true] %s229
      %232 = dma.vmem_to_hbm [thread:$0]  %s230, 128, %s4, [#allocation3]
    $region21: #{tpu_custom_call.1} parent=1 // pred_fallthru
      _
    // Predicated region
    $region22: #{tpu_custom_call.1} parent=1 // pred_check
      _
    $region23: #{tpu_custom_call.1} parent=1 // pred_check_branch
      %234 = sbr.rel (0) target = $region25
    $region24: #{tpu_custom_call.1} parent=1 // pred_region
      %235 = dma.done [#allocation3], 128
    $region25: #{tpu_custom_call.1} parent=1 // pred_fallthru
      _
    %236 = vsyncpa [#allocation3], 1

</llo_original>
